<compile_context>
chip_gen: v7x
topology: tpu7x:2x2x1
jax: 0.10.0
libtpu: 0.0.40
codegen_flags: <defaults>
</compile_context>

<pallas_src>
import functools

import jax
import jax.numpy as jnp
from jax.experimental import pallas as pl
from jax.experimental.pallas import tpu as pltpu


def _round_up(v, m):
    return ((v + m - 1) // m) * m


def _cdiv(a, b):
    return -(-a // b)


# ---------------------------------------------------------------------------
# Fused small-graph kernel: out_tile = A[row tile] @ (x @ W), one pallas_call.
# ---------------------------------------------------------------------------

def _fused_gcn_kernel(x_ref, w_ref, a_ref, o_ref):
    # support = x @ W is recomputed per row tile: negligible extra MXU flops
    # for the small graphs this path serves, and it keeps every grid step
    # independent ("parallel" -> v7x megacore friendly, no cross-step carry).
    support = jnp.dot(x_ref[...], w_ref[...],
                      preferred_element_type=jnp.float32)
    o_ref[...] = jnp.dot(a_ref[...], support,
                         preferred_element_type=jnp.float32).astype(o_ref.dtype)


def _fused_plan(n, tm_cap=512):
    """Row tiling for the fused path: >= 2 row tiles (megacore), tm % 8 == 0."""
    n_row_tiles = max(2, _cdiv(n, tm_cap))
    tm = _round_up(_cdiv(n, n_row_tiles), 8)
    return n_row_tiles, tm, n_row_tiles * tm


def _fused_footprint_bytes(n_pad, tm, f_in, f_out_pad):
    return 4 * (2 * n_pad * f_in          # x (double buffered, f32)
                + 2 * f_in * f_out_pad    # W
                + 2 * tm * n_pad          # A row tiles
                + 2 * tm * f_out_pad      # out tiles
                + n_pad * f_out_pad)      # support intermediate


def _fused_gcn(x, weight_padded, a_norm, *, n_row_tiles, tm, n_pad):
    n, f_in = x.shape
    f_out_pad = weight_padded.shape[1]

    if n_pad != n:
        x = jnp.pad(x, ((0, n_pad - n), (0, 0)))
        a_norm = jnp.pad(a_norm, ((0, n_pad - n), (0, n_pad - n)))

    vmem_limit = max(
        16 << 20,
        min(int(_fused_footprint_bytes(n_pad, tm, f_in, f_out_pad) * 1.25)
            + (8 << 20), 56 << 20))

    out = pl.pallas_call(
        _fused_gcn_kernel,
        out_shape=jax.ShapeDtypeStruct((n_pad, f_out_pad), jnp.float32),
        grid_spec=pltpu.PrefetchScalarGridSpec(
            num_scalar_prefetch=0,
            grid=(n_row_tiles,),
            in_specs=[
                pl.BlockSpec((n_pad, f_in), lambda i: (0, 0)),
                pl.BlockSpec((f_in, f_out_pad), lambda i: (0, 0)),
                pl.BlockSpec((tm, n_pad), lambda i: (i, 0)),
            ],
            out_specs=pl.BlockSpec((tm, f_out_pad), lambda i: (i, 0)),
        ),
        compiler_params=pltpu.CompilerParams(
            dimension_semantics=("parallel",),
            vmem_limit_bytes=vmem_limit,
        ),
    )(x, weight_padded, a_norm)

    if n_pad != n:
        out = out[:n]
    return out


# ---------------------------------------------------------------------------
# Generic tiled matmul (large-graph two-stage path).
# ---------------------------------------------------------------------------

def _matmul_kernel(a_ref, b_ref, o_ref, acc_ref, *, compute_dtype, tk,
                   b_resident):
    """One (j, i, k) grid step of o = a @ b with an f32 VMEM accumulator.

    Grid order is (col tile j, row tile i, reduction k) so a full-K resident
    `b` block (index (0, j)) is only DMA'd when j changes -- never re-fetched
    per row tile.  Inputs are cast to `compute_dtype` inside the kernel so the
    wrapper never emits a standalone HBM->HBM astype of the big operands.
    """
    k = pl.program_id(2)

    @pl.when(k == 0)
    def _():
        acc_ref[...] = jnp.zeros_like(acc_ref)

    a_tile = a_ref[...].astype(compute_dtype)
    if b_resident:
        off = pl.multiple_of(k * tk, tk)
        b_tile = b_ref[pl.ds(off, tk), :]
    else:
        b_tile = b_ref[...]
    b_tile = b_tile.astype(compute_dtype)

    acc_ref[...] += jnp.dot(a_tile, b_tile, preferred_element_type=jnp.float32)

    # Write back only on the last reduction step (no per-K-step cast + store).
    @pl.when(k == pl.num_programs(2) - 1)
    def _():
        o_ref[...] = acc_ref[...].astype(o_ref.dtype)


def _tiled_matmul(a, b, *, out_dtype, compute_dtype=jnp.bfloat16,
                  tm_cap=1024, tn_cap=256, tk_cap=2048,
                  resident_b_budget=16 * 1024 * 1024):
    """out = a @ b via a tiled Pallas matmul (f32 MXU accumulation)."""
    M, K = a.shape
    K2, N = b.shape
    assert K == K2, (a.shape, b.shape)

    # Tile selection: aligned caps; zero-pad instead of falling back to the
    # full dimension (so a prime-ish N can never blow the VMEM budget).
    tn = min(tn_cap, _round_up(N, 128))
    tk = min(tk_cap, _round_up(K, 128))
    tm_full = _round_up(M, 8)
    tm = min(tm_cap, tm_full)
    if tm == tm_full and M > 8:
        # Guarantee >= 2 row tiles so the "parallel" row axis can actually be
        # sharded across both v7x TensorCores.
        tm = _round_up(_cdiv(M, 2), 8)

    M_pad = _round_up(M, tm)
    K_pad = _round_up(K, tk)
    N_pad = _round_up(N, tn)

    if (M_pad, K_pad) != (M, K):
        a = jnp.pad(a, ((0, M_pad - M), (0, K_pad - K)))
    if (K_pad, N_pad) != (K, N):
        b = jnp.pad(b, ((0, K_pad - K), (0, N_pad - N)))

    grid = (N_pad // tn, M_pad // tm, K_pad // tk)   # (j, i, k)

    # Keep b resident across the whole reduction when it is small enough:
    # removes the once-per-row-tile re-fetch of `support` in stage 2.
    b_item = b.dtype.itemsize
    b_bytes_resident = 2 * K_pad * tn * b_item
    b_resident = b_bytes_resident <= resident_b_budget

    a_bytes = 2 * tm * tk * a.dtype.itemsize
    b_bytes = b_bytes_resident if b_resident else 2 * tk * tn * b_item
    o_bytes = 2 * tm * tn * jnp.dtype(out_dtype).itemsize
    footprint = a_bytes + b_bytes + o_bytes + tm * tn * 4
    vmem_limit = max(16 << 20,
                     min(int(footprint * 1.25) + (8 << 20), 56 << 20))

    if b_resident:
        b_spec = pl.BlockSpec((K_pad, tn), lambda j, i, k: (0, j))
    else:
        b_spec = pl.BlockSpec((tk, tn), lambda j, i, k: (k, j))

    kernel = functools.partial(_matmul_kernel, compute_dtype=compute_dtype,
                               tk=tk, b_resident=b_resident)

    cost = pl.CostEstimate(
        flops=2 * M_pad * K_pad * N_pad,
        transcendentals=0,
        bytes_accessed=(M_pad * K_pad * a.dtype.itemsize
                        + K_pad * N_pad * b_item
                        + M_pad * N_pad * jnp.dtype(out_dtype).itemsize),
    )

    out = pl.pallas_call(
        kernel,
        out_shape=jax.ShapeDtypeStruct((M_pad, N_pad), out_dtype),
        grid_spec=pltpu.PrefetchScalarGridSpec(
            num_scalar_prefetch=0,
            grid=grid,
            in_specs=[
                pl.BlockSpec((tm, tk), lambda j, i, k: (i, k)),
                b_spec,
            ],
            out_specs=pl.BlockSpec((tm, tn), lambda j, i, k: (i, j)),
            scratch_shapes=[pltpu.VMEM((tm, tn), jnp.float32)],
        ),
        compiler_params=pltpu.CompilerParams(
            dimension_semantics=("parallel", "parallel", "arbitrary"),
            vmem_limit_bytes=vmem_limit,
        ),
        cost_estimate=cost,
    )(a, b)

    if (M_pad, N_pad) != (M, N):
        out = out[:M, :N]
    return out


def _gcn_two_stage(x, weight_padded, a_norm, *, f_out,
                   compute_dtype=jnp.bfloat16,
                   tm_cap=1024, tn_cap=256, tk_cap=2048):
    """Large-graph path: two tiled matmuls, support streamed in bf16."""
    # Stage 1: support = x @ W (x/W cast to bf16 inside the kernel; support is
    # emitted in bf16 so stage 2 streams it at 2 B/elem).
    support = _tiled_matmul(x, weight_padded, out_dtype=compute_dtype,
                            compute_dtype=compute_dtype,
                            tm_cap=tm_cap, tn_cap=tn_cap, tk_cap=tk_cap)
    # Stage 2: out = A_norm @ support.  A is streamed in its stored dtype and
    # cast tile-by-tile inside the kernel (no standalone N^2 astype op).
    out = _tiled_matmul(a_norm, support, out_dtype=jnp.float32,
                        compute_dtype=compute_dtype,
                        tm_cap=tm_cap, tn_cap=tn_cap, tk_cap=tk_cap)
    if out.shape[1] != f_out:
        out = out[:, :f_out]
    return out


# ---------------------------------------------------------------------------
# Public entry point: GCNLayer.forward
# ---------------------------------------------------------------------------

@functools.partial(jax.jit, static_argnames=("compute_dtype",))
def gcn_layer(x, weight, a_norm, *, compute_dtype=jnp.bfloat16):
    """GCNLayer.forward: A_norm @ (x @ W)."""
    n, f_in = x.shape
    f_in_w, f_out = weight.shape
    assert f_in == f_in_w
    assert a_norm.shape == (n, n)

    # Lane-dense output columns: pad F_out up to a multiple of 128 (zeros
    # contribute nothing; sliced off at the end).
    f_out_pad = _round_up(f_out, 128)
    w = weight if f_out_pad == f_out else jnp.pad(
        weight, ((0, 0), (0, f_out_pad - f_out)))

    # Small-graph fused path (one kernel launch, all-f32, support never
    # round-trips HBM).
    n_row_tiles, tm, n_pad = _fused_plan(n)
    if (n <= 1024 and
            _fused_footprint_bytes(n_pad, tm, f_in, f_out_pad) <= (24 << 20)):
        out = _fused_gcn(x, w, a_norm,
                         n_row_tiles=n_row_tiles, tm=tm, n_pad=n_pad)
        return out[:, :f_out] if f_out_pad != f_out else out

    # Large-graph two-stage path.
    return _gcn_two_stage(x, w, a_norm, f_out=f_out,
                          compute_dtype=compute_dtype)


def xavier_uniform(key, shape, dtype=jnp.float32):
    fan_in, fan_out = shape
    bound = (6.0 / (fan_in + fan_out)) ** 0.5
    return jax.random.uniform(key, shape, dtype, minval=-bound, maxval=bound)


if __name__ == "__main__":
    key = jax.random.PRNGKey(0)
    k_x1, k_w1, k_a1, k_x2, k_w2, k_a2 = jax.random.split(key, 6)

    def make_inputs(kx, kw, ka, n, f_in, f_out):
        x = jax.random.normal(kx, (n, f_in), dtype=jnp.float32)
        w = xavier_uniform(kw, (f_in, f_out))
        raw = (jax.random.uniform(ka, (n, n)) < 0.1).astype(jnp.float32)
        adj = jnp.maximum(raw, raw.T) + jnp.eye(n, dtype=jnp.float32)
        d = 1.0 / jnp.sqrt(adj.sum(axis=1))
        a_norm = adj * d[:, None] * d[None, :]
        return x, w, a_norm

    # --- Test 1: small demo shapes -> fused single-kernel path.
    N, F_IN, F_OUT = 256, 64, 32
    x, w, a_norm = make_inputs(k_x1, k_w1, k_a1, N, F_IN, F_OUT)
    out = jax.block_until_ready(gcn_layer(x, w, a_norm))
    ref = a_norm @ (x @ w)
    assert out.shape == (N, F_OUT)
    assert jnp.allclose(out, ref, atol=2e-2, rtol=2e-2), (
        float(jnp.max(jnp.abs(out - ref))))

    # --- Test 2: exercise the two-stage tiled path (padding of odd shapes,
    #     resident-B support, multi-step K reduction) at a small size by
    #     forcing small tile caps.
    N2, F_IN2, F_OUT2 = 640, 200, 96
    x2, w2, a2 = make_inputs(k_x2, k_w2, k_a2, N2, F_IN2, F_OUT2)
    f_out_pad2 = _round_up(F_OUT2, 128)
    w2p = jnp.pad(w2, ((0, 0), (0, f_out_pad2 - F_OUT2)))
    two_stage = jax.jit(functools.partial(
        _gcn_two_stage, f_out=F_OUT2, tm_cap=256, tn_cap=128, tk_cap=256))
    out2 = jax.block_until_ready(two_stage(x2, w2p, a2))
    ref2 = a2 @ (x2 @ w2)
    assert out2.shape == (N2, F_OUT2)
    assert jnp.allclose(out2, ref2, atol=2e-2, rtol=2e-2), (
        float(jnp.max(jnp.abs(out2 - ref2))))

    print("KERNEL_OK")
</pallas_src>

<mosaic_0001>
module attributes {stable_mosaic.version = 11 : i64} {
  func.func @_fused_gcn_kernel(%arg0: i32, %arg1: memref<256x64xf32, #tpu.memory_space<vmem>>, %arg2: memref<64x128xf32, #tpu.memory_space<vmem>>, %arg3: memref<128x256xf32, #tpu.memory_space<vmem>>, %arg4: memref<128x128xf32, #tpu.memory_space<vmem>>) attributes {dimension_semantics = [#tpu.dimension_semantics<parallel>], iteration_bounds = array<i64: 2>, scalar_prefetch = 0 : i64, scratch_operands = 0 : i64, tpu.core_type = #tpu.core_type<tc>, window_params = [{pipeline_mode = #tpu.pipeline_mode<synchronous>, transform_indices = @transform_0, window_bounds = array<i64: 256, 64>}, {pipeline_mode = #tpu.pipeline_mode<synchronous>, transform_indices = @transform_1, window_bounds = array<i64: 64, 128>}, {transform_indices = @transform_2, window_bounds = array<i64: 128, 256>}, {transform_indices = @transform_3, window_bounds = array<i64: 128, 128>}]} {
    %c0 = arith.constant 0 : index
    %c0_0 = arith.constant 0 : index
    %0 = vector.load %arg1[%c0, %c0_0] : memref<256x64xf32, #tpu.memory_space<vmem>>, vector<256x64xf32>
    %c0_1 = arith.constant 0 : index
    %c0_2 = arith.constant 0 : index
    %1 = vector.load %arg2[%c0_1, %c0_2] : memref<64x128xf32, #tpu.memory_space<vmem>>, vector<64x128xf32>
    %cst = arith.constant dense<0.000000e+00> : vector<256x128xf32>
    %2 = tpu.matmul %0, %1, %cst {dimension_numbers = #tpu.dot_dimension_numbers<[1], [0], [0], [1], [0, 0, 1, 1], [], []>} : vector<256x64xf32>, vector<64x128xf32>, vector<256x128xf32> -> vector<256x128xf32>
    %c0_3 = arith.constant 0 : index
    %c0_4 = arith.constant 0 : index
    %3 = vector.load %arg3[%c0_3, %c0_4] : memref<128x256xf32, #tpu.memory_space<vmem>>, vector<128x256xf32>
    %cst_5 = arith.constant dense<0.000000e+00> : vector<128x128xf32>
    %4 = tpu.matmul %3, %2, %cst_5 {dimension_numbers = #tpu.dot_dimension_numbers<[1], [0], [0], [1], [0, 0, 1, 1], [], []>} : vector<128x256xf32>, vector<256x128xf32>, vector<128x128xf32> -> vector<128x128xf32>
    %c0_6 = arith.constant 0 : index
    %c0_7 = arith.constant 0 : index
    %5 = vector.load %arg4[%c0_6, %c0_7] : memref<128x128xf32, #tpu.memory_space<vmem>>, vector<128x128xf32>
    tpu.vector_store %arg4[%c0_6, %c0_7], %4 {strides = array<i32>} : memref<128x128xf32, #tpu.memory_space<vmem>>, vector<128x128xf32>,
    return
  }
  func.func @transform_0(%arg0: i32) -> (i32, i32) {
    %c0_i32 = arith.constant 0 : i32
    %c0_i32_0 = arith.constant 0 : i32
    %c0_i32_1 = arith.constant 0 : i32
    return %c0_i32, %c0_i32_0 : i32, i32
  }
  func.func @transform_1(%arg0: i32) -> (i32, i32) {
    %c0_i32 = arith.constant 0 : i32
    %c0_i32_0 = arith.constant 0 : i32
    %c0_i32_1 = arith.constant 0 : i32
    return %c0_i32, %c0_i32_0 : i32, i32
  }
  func.func @transform_2(%arg0: i32) -> (i32, i32) {
    %c0_i32 = arith.constant 0 : i32
    %c0_i32_0 = arith.constant 0 : i32
    return %arg0, %c0_i32 : i32, i32
  }
  func.func @transform_3(%arg0: i32) -> (i32, i32) {
    %c0_i32 = arith.constant 0 : i32
    %c0_i32_0 = arith.constant 0 : i32
    return %arg0, %c0_i32 : i32, i32
  }
}

</mosaic_0001>

<llo_original>
// kernel: gcn_layer.1
$region0: #{gcn_layer.1}
  #allocation0 [shape = 'u32[]', space=smem, size = 0x4, offset = 0x4, fixed_abs, tag = 'smem constant byte address 0x4 - core index']
  #allocation1 [shape = 'u32[144,128]{1,0:T(1,128)}', space=vmem, size = 0x12000, scoped, tag = 'internal scratch']
  %s0 = inlined_call_operand.vmem [shape: f32[256,64], index: 0, kind: input, shape index: {}]
  %s1 = inlined_call_operand.vmem [shape: f32[64,128], index: 1, kind: input, shape index: {}]
  %s2 = inlined_call_operand.vmem [shape: f32[256,256], index: 2, kind: input, shape index: {}]
  %s3 = inlined_call_operand.vmem [shape: f32[256,128], index: 3, kind: output, shape index: {}]
  %s4 = sld [smem:[#allocation0]]
  $region45: #{gcn_layer.1} parent=0
    _
  %s6 = ssub.s32 1, %s4
  %s7 = scalar_select 0, %s6, %s4
  loop: start=0, step=1, limit=4
  $region2: #{gcn_layer.1} parent=0 // loop_pre_header
    _
  $region3: #{gcn_layer.1} parent=0 // loop_header
    %s9 = sphi 0, %s13
    %p10 = scmp.ge.s32.totalorder %s9, 4
    %s17 = sphi 0, %s17
    %s19 = sphi 0, %s17
    %s20 = sphi 0, %s19
    %s34 = sphi 0, %s20
    %s38 = sphi 0, %s38
    %s40 = sphi 0, %s38
    %s41 = sphi 0, %s40
    %s55 = sphi 0, %s41
    %s61 = sphi 0, %s63
    %s64 = sphi 0, %s61
    %s65 = sphi 0, %s64
    %s81 = sphi 0, %s65
    %s87 = sphi 0, %s89
    %s90 = sphi 0, %s87
    %s91 = sphi 0, %s90
    %s107 = sphi 0, %s91
  $region4: #{gcn_layer.1} parent=0 // loop_header_branch
    %12 = sbr.rel (%p10) target = $region8
  $region5: #{gcn_layer.1} parent=0 // loop_body
    %s14 = ssub.s32 %s9, 1
    %s15 = ssub.s32 %s9, 2
    %s16 = sadd.s32 %s9, 1
    %s18 = sadd.s32 %s17, 1
    %p21 = scmp.eq.s32.totalorder %s9, 1
    %p22 = scmp.ne.s32.totalorder %s17, %s19
    %p23 = scmp.eq.s32.totalorder %s9, 0
    %p24 = por %p22, %p23
    %p25 = scmp.ne.s32.totalorder %s17, %s19
    %p26 = scmp.eq.s32.totalorder %s14, 1
    %p27 = por %p25, %p26
    %p28 = scmp.ne.s32.totalorder %s19, %s20
    %p29 = scmp.eq.s32.totalorder %s14, 0
    %p30 = por %p28, %p29
    %p31 = scmp.ne.s32.totalorder %s19, %s20
    %p32 = scmp.eq.s32.totalorder %s15, 1
    %p33 = por %p31, %p32
    %p35 = scmp.ne.s32.totalorder %s20, %s34
    %p36 = scmp.eq.s32.totalorder %s15, 0
    %p37 = por %p35, %p36
    %s39 = sadd.s32 %s38, 1
    %p42 = scmp.eq.s32.totalorder %s9, 1
    %p43 = scmp.ne.s32.totalorder %s38, %s40
    %p44 = scmp.eq.s32.totalorder %s9, 0
    %p45 = por %p43, %p44
    %p46 = scmp.ne.s32.totalorder %s38, %s40
    %p47 = scmp.eq.s32.totalorder %s14, 1
    %p48 = por %p46, %p47
    %p49 = scmp.ne.s32.totalorder %s40, %s41
    %p50 = scmp.eq.s32.totalorder %s14, 0
    %p51 = por %p49, %p50
    %p52 = scmp.ne.s32.totalorder %s40, %s41
    %p53 = scmp.eq.s32.totalorder %s15, 1
    %p54 = por %p52, %p53
    %p56 = scmp.ne.s32.totalorder %s41, %s55
    %p57 = scmp.eq.s32.totalorder %s15, 0
    %p58 = por %p56, %p57
    %s59 = ssub.s32 %s9, %s16
    %p60 = scmp.eq.s32.totalorder %s59, 0
    %s62 = sadd.s32 %s61, 1
    %s63 = scalar_select %p60, %s61, %s62
    %p66 = pneg %p60
    %p67 = scmp.eq.s32.totalorder %s9, 1
    %p68 = por %p66, %p67
    %p69 = scmp.ne.s32.totalorder %s61, %s64
    %p70 = scmp.eq.s32.totalorder %s9, 0
    %p71 = por %p69, %p70
    %p72 = scmp.ne.s32.totalorder %s61, %s64
    %p73 = scmp.eq.s32.totalorder %s14, 1
    %p74 = por %p72, %p73
    %p75 = scmp.ne.s32.totalorder %s64, %s65
    %p76 = scmp.eq.s32.totalorder %s14, 0
    %p77 = por %p75, %p76
    %p78 = scmp.ne.s32.totalorder %s64, %s65
    %p79 = scmp.eq.s32.totalorder %s15, 1
    %p80 = por %p78, %p79
    %p82 = scmp.ne.s32.totalorder %s65, %s81
    %p83 = scmp.eq.s32.totalorder %s15, 0
    %p84 = por %p82, %p83
    %s85 = ssub.s32 %s9, %s16
    %p86 = scmp.eq.s32.totalorder %s85, 0
    %s88 = sadd.s32 %s87, 1
    %s89 = scalar_select %p86, %s87, %s88
    %p92 = pneg %p86
    %p93 = scmp.eq.s32.totalorder %s9, 1
    %p94 = por %p92, %p93
    %p95 = scmp.ne.s32.totalorder %s87, %s90
    %p96 = scmp.eq.s32.totalorder %s9, 0
    %p97 = por %p95, %p96
    %p98 = scmp.ne.s32.totalorder %s87, %s90
    %p99 = scmp.eq.s32.totalorder %s14, 1
    %p100 = por %p98, %p99
    %p101 = scmp.ne.s32.totalorder %s90, %s91
    %p102 = scmp.eq.s32.totalorder %s14, 0
    %p103 = por %p101, %p102
    %p104 = scmp.ne.s32.totalorder %s90, %s91
    %p105 = scmp.eq.s32.totalorder %s15, 1
    %p106 = por %p104, %p105
    %p108 = scmp.ne.s32.totalorder %s91, %s107
    %p109 = scmp.eq.s32.totalorder %s15, 0
    %p110 = por %p108, %p109
    %p111 = scmp.le.s32.totalorder 1, %s9
    %p112 = scmp.lt.s32.totalorder %s9, 3
    %p113 = pnand %p111, %p112
    %p114 = pneg %p113
    // Predicated region
    $region9: #{gcn_layer.1} parent=5 // pred_check
      _
    $region10: #{gcn_layer.1} parent=5 // pred_check_branch
      %116 = sbr.rel (%p113) target = $region12
    $region11: #{gcn_layer.1} parent=5 // pred_region
      %s117 = ssub.s32 %s9, 1
      // Predicated region
      $region13: #{gcn_layer.1} parent=11 // pred_check
        %p118 = pneg %p30
      $region14: #{gcn_layer.1} parent=11 // pred_check_branch
        %120 = sbr.rel (%p118) target = $region16
      $region15: #{gcn_layer.1} parent=11 // pred_region
        _
      $region16: #{gcn_layer.1} parent=11 // pred_fallthru
        _
      // Predicated region
      $region17: #{gcn_layer.1} parent=11 // pred_check
        %p121 = pneg %p51
      $region18: #{gcn_layer.1} parent=11 // pred_check_branch
        %123 = sbr.rel (%p121) target = $region20
      $region19: #{gcn_layer.1} parent=11 // pred_region
        _
      $region20: #{gcn_layer.1} parent=11 // pred_fallthru
        _
    $region12: #{gcn_layer.1} parent=5 // pred_fallthru
      _
    %p124 = scmp.lt.s32.totalorder %s9, 2
    // Predicated region
    $region21: #{gcn_layer.1} parent=5 // pred_check
      %p125 = pneg %p124
    $region22: #{gcn_layer.1} parent=5 // pred_check_branch
      %127 = sbr.rel (%p125) target = $region24
    $region23: #{gcn_layer.1} parent=5 // pred_region
      // Predicated region
      $region25: #{gcn_layer.1} parent=23 // pred_check
        %p128 = pneg %p71
      $region26: #{gcn_layer.1} parent=23 // pred_check_branch
        %130 = sbr.rel (%p128) target = $region28
      $region27: #{gcn_layer.1} parent=23 // pred_region
        %s131 = smul.u32 16, %s9
        %p132 = scmp.lt.s32.totalorder %s131, 31
        %s133 = scalar_select %p132, %s131, 31
        %s134 = smul.addr %s133, 2
        %s135 = smul.addr %s134, 8
        %s136 = scalar_lea.vmem %s2, %s135
        %s137 = smul.u32 16, %s9
      $region28: #{gcn_layer.1} parent=23 // pred_fallthru
        _
    $region24: #{gcn_layer.1} parent=5 // pred_fallthru
      _
    %p138 = scmp.le.s32.totalorder 1, %s9
    %p139 = scmp.lt.s32.totalorder %s9, 3
    %p140 = pnand %p138, %p139
    %p141 = pneg %p140
    // Predicated region
    $region29: #{gcn_layer.1} parent=5 // pred_check
      _
    $region30: #{gcn_layer.1} parent=5 // pred_check_branch
      %143 = sbr.rel (%p140) target = $region32
    $region31: #{gcn_layer.1} parent=5 // pred_region
      %s144 = ssub.s32 %s9, 1
      %p145 = pneg %p30
      %p146 = pneg %p27
      %p147 = pneg %p51
      %p148 = pneg %p48
      %s149 = smul.u32 16, %s14
      %p150 = scmp.lt.s32.totalorder %s149, 31
      %s151 = scalar_select %p150, %s149, 31
      %s152 = smul.addr %s151, 2
      %s153 = smul.addr %s152, 8
      %s154 = scalar_lea.vmem %s2, %s153
      %p155 = pneg %p77
      %p156 = pneg %p74
      %p157 = pneg %p103
      %p158 = pneg %p100
      %s159 = smul.u32 16, %s14
      %p160 = scmp.lt.s32.totalorder %s159, 31
      %s161 = scalar_select %p160, %s159, 31
      %s162 = smul.addr %s161, 8
      %s163 = scalar_lea.vmem %s3, %s162
      %s164 = smul.u32 16, %s14
      %p165 = scmp.lt.s32.totalorder %s164, 31
      %s166 = scalar_select %p165, %s164, 31
      %s167 = smul.addr %s166, 2
      %s168 = smul.addr %s167, 8
      %s169 = scalar_lea.vmem %s2, %s168
      %s170 = smul.u32 16, %s14
      %s171 = smul.u32 16, %s14
      %p172 = scmp.lt.s32.totalorder %s171, 31
      %s173 = scalar_select %p172, %s171, 31
      %s174 = smul.addr %s173, 8
      %s175 = scalar_lea.vmem %s3, %s174
      %s176 = smul.u32 16, %s14
      %v177 = vld [vmem:[%s0] sm:$0xff]
      %v178 = vld [vmem:[%s0 + $0x8] sm:$0xff]
      %v179 = vld [vmem:[%s0 + $0x10] sm:$0xff]
      %v180 = vld [vmem:[%s0 + $0x18] sm:$0xff]
      %v181 = vld [vmem:[%s0 + $0x20] sm:$0xff]
      %v182 = vld [vmem:[%s0 + $0x28] sm:$0xff]
      %v183 = vld [vmem:[%s0 + $0x30] sm:$0xff]
      %v184 = vld [vmem:[%s0 + $0x38] sm:$0xff]
      %v185 = vld [vmem:[%s0 + $0x40] sm:$0xff]
      %v186 = vld [vmem:[%s0 + $0x48] sm:$0xff]
      %v187 = vld [vmem:[%s0 + $0x50] sm:$0xff]
      %v188 = vld [vmem:[%s0 + $0x58] sm:$0xff]
      %v189 = vld [vmem:[%s0 + $0x60] sm:$0xff]
      %v190 = vld [vmem:[%s0 + $0x68] sm:$0xff]
      %v191 = vld [vmem:[%s0 + $0x70] sm:$0xff]
      %v192 = vld [vmem:[%s0 + $0x78] sm:$0xff]
      %v193 = vld [vmem:[%s0 + $0x80] sm:$0xff]
      %v194 = vld [vmem:[%s0 + $0x88] sm:$0xff]
      %v195 = vld [vmem:[%s0 + $0x90] sm:$0xff]
      %v196 = vld [vmem:[%s0 + $0x98] sm:$0xff]
      %v197 = vld [vmem:[%s0 + $0xa0] sm:$0xff]
      %v198 = vld [vmem:[%s0 + $0xa8] sm:$0xff]
      %v199 = vld [vmem:[%s0 + $0xb0] sm:$0xff]
      %v200 = vld [vmem:[%s0 + $0xb8] sm:$0xff]
      %v201 = vld [vmem:[%s0 + $0xc0] sm:$0xff]
      %v202 = vld [vmem:[%s0 + $0xc8] sm:$0xff]
      %v203 = vld [vmem:[%s0 + $0xd0] sm:$0xff]
      %v204 = vld [vmem:[%s0 + $0xd8] sm:$0xff]
      %v205 = vld [vmem:[%s0 + $0xe0] sm:$0xff]
      %v206 = vld [vmem:[%s0 + $0xe8] sm:$0xff]
      %v207 = vld [vmem:[%s0 + $0xf0] sm:$0xff]
      %v208 = vld [vmem:[%s0 + $0xf8] sm:$0xff]
      %v209 = vld [vmem:[%s1] sm:$0xff]
      %v210 = vld [vmem:[%s1 + $0x8] sm:$0xff]
      %v211 = vld [vmem:[%s1 + $0x10] sm:$0xff]
      %v212 = vld [vmem:[%s1 + $0x18] sm:$0xff]
      %v213 = vld [vmem:[%s1 + $0x20] sm:$0xff]
      %v214 = vld [vmem:[%s1 + $0x28] sm:$0xff]
      %v215 = vld [vmem:[%s1 + $0x30] sm:$0xff]
      %v216 = vld [vmem:[%s1 + $0x38] sm:$0xff]
      %vm217 = vcmask 523264
      %v219 = vsel %vm217, %v177, 0
      %v222 = vsel %vm217, %v178, 0
      %v225 = vsel %vm217, %v179, 0
      %v228 = vsel %vm217, %v180, 0
      %v231 = vsel %vm217, %v181, 0
      %v234 = vsel %vm217, %v182, 0
      %v237 = vsel %vm217, %v183, 0
      %v240 = vsel %vm217, %v184, 0
      %v243 = vsel %vm217, %v185, 0
      %v246 = vsel %vm217, %v186, 0
      %v249 = vsel %vm217, %v187, 0
      %v252 = vsel %vm217, %v188, 0
      %v255 = vsel %vm217, %v189, 0
      %v258 = vsel %vm217, %v190, 0
      %v261 = vsel %vm217, %v191, 0
      %v264 = vsel %vm217, %v192, 0
      %v267 = vsel %vm217, %v193, 0
      %v270 = vsel %vm217, %v194, 0
      %v273 = vsel %vm217, %v195, 0
      %v276 = vsel %vm217, %v196, 0
      %v279 = vsel %vm217, %v197, 0
      %v282 = vsel %vm217, %v198, 0
      %v285 = vsel %vm217, %v199, 0
      %v288 = vsel %vm217, %v200, 0
      %v291 = vsel %vm217, %v201, 0
      %v294 = vsel %vm217, %v202, 0
      %v297 = vsel %vm217, %v203, 0
      %v300 = vsel %vm217, %v204, 0
      %v303 = vsel %vm217, %v205, 0
      %v306 = vsel %vm217, %v206, 0
      %v309 = vsel %vm217, %v207, 0
      %v312 = vsel %vm217, %v208, 0
      %314 = vmatprep.subr.mxu0 0.0
      %315 = vmatpush1.msra.mxu0 %v209
      %316 = vmatprep.subr.mxu0 0.0
      %317 = vmatpush1.msra.mxu0 %v210
      %318 = vmatprep.subr.mxu0 0.0
      %319 = vmatpush1.msra.mxu0 %v211
      %320 = vmatprep.subr.mxu0 0.0
      %321 = vmatpush1.msra.mxu0 %v212
      %322 = vmatprep.subr.mxu0 0.0
      %323 = vmatpush1.msra.mxu0 %v213
      %324 = vmatprep.subr.mxu0 0.0
      %325 = vmatpush1.msra.mxu0 %v214
      %326 = vmatprep.subr.mxu0 0.0
      %327 = vmatpush1.msra.mxu0 %v215
      %328 = vmatprep.subr.mxu0 0.0
      %329 = vmatpush1.msra.mxu0 %v216
      %330 = vmatprep.subr.mxu0 0.0
      %331 = vmatpush1.msra.mxu0 0.0
      %332 = vmatprep.subr.mxu0 0.0
      %333 = vmatpush1.msra.mxu0 0.0
      %334 = vmatprep.subr.mxu0 0.0
      %335 = vmatpush1.msra.mxu0 0.0
      %336 = vmatprep.subr.mxu0 0.0
      %337 = vmatpush1.msra.mxu0 0.0
      %338 = vmatprep.subr.mxu0 0.0
      %339 = vmatpush1.msra.mxu0 0.0
      %340 = vmatprep.subr.mxu0 0.0
      %341 = vmatpush1.msra.mxu0 0.0
      %342 = vmatprep.subr.mxu0 0.0
      %343 = vmatpush1.msra.mxu0 0.0
      %344 = vmatprep.subr.mxu0 0.0
      %345 = vmatpush1.msra.mxu0 0.0
      %346 = vmatprep.subr.mxu0 0.0
      %347 = vmatpush1.msra.mxu0 0.0
      %348 = vmatprep.subr.mxu0 0.0
      %349 = vmatpush1.msra.mxu0 0.0
      %350 = vmatprep.subr.mxu0 0.0
      %351 = vmatpush1.msra.mxu0 0.0
      %352 = vmatprep.subr.mxu0 0.0
      %353 = vmatpush1.msra.mxu0 0.0
      %354 = vmatprep.subr.mxu0 0.0
      %355 = vmatpush1.msra.mxu0 0.0
      %356 = vmatprep.subr.mxu0 0.0
      %357 = vmatpush1.msra.mxu0 0.0
      %358 = vmatprep.subr.mxu0 0.0
      %359 = vmatpush1.msra.mxu0 0.0
      %360 = vmatprep.subr.mxu0 0.0
      %361 = vmatpush1.msra.mxu0 0.0
      %362 = vmatprep.subr.mxu0 0.0
      %363 = vmatpush1.msra.mxu0 0.0
      %364 = vmatprep.subr.mxu0 0.0
      %365 = vmatpush1.msra.mxu0 0.0
      %366 = vmatprep.subr.mxu0 0.0
      %367 = vmatpush1.msra.mxu0 0.0
      %368 = vmatprep.subr.mxu0 0.0
      %369 = vmatpush1.msra.mxu0 0.0
      %370 = vmatprep.subr.mxu0 0.0
      %371 = vmatpush1.msra.mxu0 0.0
      %372 = vmatprep.subr.mxu0 0.0
      %373 = vmatpush1.msra.mxu0 0.0
      %374 = vmatprep.subr.mxu0 0.0
      %375 = vmatpush1.msra.mxu0 0.0
      %376 = vmatprep.subr.mxu0 0.0
      %377 = vmatpush1.msra.mxu0 0.0
      %378 = vmatprep.mubr.f32.mxu0 0.0
      %379 = vmatmul.mubr.f32.gmra.mrb[0].mxu0 %v219
      %v380 = vpop.f32.mrb[0].mxu0
      %v381 = vadd.f32 0.0, %v380
      %v382 = vpop.f32.mrb[0].mxu0
      %383 = vmatprep.mubr.f32.mxu0 0.0
      %384 = vmatmul.mubr.f32.gmra.mrb[0].mxu0 %v222
      %v385 = vpop.f32.mrb[0].mxu0
      %v386 = vadd.f32 0.0, %v385
      %v387 = vpop.f32.mrb[0].mxu0
      %388 = vmatprep.mubr.f32.mxu0 0.0
      %389 = vmatmul.mubr.f32.gmra.mrb[0].mxu0 %v225
      %v390 = vpop.f32.mrb[0].mxu0
      %v391 = vadd.f32 0.0, %v390
      %v392 = vpop.f32.mrb[0].mxu0
      %393 = vmatprep.mubr.f32.mxu0 0.0
      %394 = vmatmul.mubr.f32.gmra.mrb[0].mxu0 %v228
      %v395 = vpop.f32.mrb[0].mxu0
      %v396 = vadd.f32 0.0, %v395
      %v397 = vpop.f32.mrb[0].mxu0
      %398 = vmatprep.mubr.f32.mxu0 0.0
      %399 = vmatmul.mubr.f32.gmra.mrb[0].mxu0 %v231
      %v400 = vpop.f32.mrb[0].mxu0
      %v401 = vadd.f32 0.0, %v400
      %v402 = vpop.f32.mrb[0].mxu0
      %403 = vmatprep.mubr.f32.mxu0 0.0
      %404 = vmatmul.mubr.f32.gmra.mrb[0].mxu0 %v234
      %v405 = vpop.f32.mrb[0].mxu0
      %v406 = vadd.f32 0.0, %v405
      %v407 = vpop.f32.mrb[0].mxu0
      %408 = vmatprep.mubr.f32.mxu0 0.0
      %409 = vmatmul.mubr.f32.gmra.mrb[0].mxu0 %v237
      %v410 = vpop.f32.mrb[0].mxu0
      %v411 = vadd.f32 0.0, %v410
      %v412 = vpop.f32.mrb[0].mxu0
      %413 = vmatprep.mubr.f32.mxu0 0.0
      %414 = vmatmul.mubr.f32.gmra.mrb[0].mxu0 %v240
      %v415 = vpop.f32.mrb[0].mxu0
      %v416 = vadd.f32 0.0, %v415
      %v417 = vpop.f32.mrb[0].mxu0
      %418 = vmatprep.mubr.f32.mxu0 0.0
      %419 = vmatmul.mubr.f32.gmra.mrb[0].mxu0 %v243
      %v420 = vpop.f32.mrb[0].mxu0
      %v421 = vadd.f32 0.0, %v420
      %v422 = vpop.f32.mrb[0].mxu0
      %423 = vmatprep.mubr.f32.mxu0 0.0
      %424 = vmatmul.mubr.f32.gmra.mrb[0].mxu0 %v246
      %v425 = vpop.f32.mrb[0].mxu0
      %v426 = vadd.f32 0.0, %v425
      %v427 = vpop.f32.mrb[0].mxu0
      %428 = vmatprep.mubr.f32.mxu0 0.0
      %429 = vmatmul.mubr.f32.gmra.mrb[0].mxu0 %v249
      %v430 = vpop.f32.mrb[0].mxu0
      %v431 = vadd.f32 0.0, %v430
      %v432 = vpop.f32.mrb[0].mxu0
      %433 = vmatprep.mubr.f32.mxu0 0.0
      %434 = vmatmul.mubr.f32.gmra.mrb[0].mxu0 %v252
      %v435 = vpop.f32.mrb[0].mxu0
      %v436 = vadd.f32 0.0, %v435
      %v437 = vpop.f32.mrb[0].mxu0
      %438 = vmatprep.mubr.f32.mxu0 0.0
      %439 = vmatmul.mubr.f32.gmra.mrb[0].mxu0 %v255
      %v440 = vpop.f32.mrb[0].mxu0
      %v441 = vadd.f32 0.0, %v440
      %v442 = vpop.f32.mrb[0].mxu0
      %443 = vmatprep.mubr.f32.mxu0 0.0
      %444 = vmatmul.mubr.f32.gmra.mrb[0].mxu0 %v258
      %v445 = vpop.f32.mrb[0].mxu0
      %v446 = vadd.f32 0.0, %v445
      %v447 = vpop.f32.mrb[0].mxu0
      %448 = vmatprep.mubr.f32.mxu0 0.0
      %449 = vmatmul.mubr.f32.gmra.mrb[0].mxu0 %v261
      %v450 = vpop.f32.mrb[0].mxu0
      %v451 = vadd.f32 0.0, %v450
      %v452 = vpop.f32.mrb[0].mxu0
      %453 = vmatprep.mubr.f32.mxu0 0.0
      %454 = vmatmul.mubr.f32.gmra.mrb[0].mxu0 %v264
      %v455 = vpop.f32.mrb[0].mxu0
      %v456 = vadd.f32 0.0, %v455
      %v457 = vpop.f32.mrb[0].mxu0
      %458 = vmatprep.mubr.f32.mxu0 0.0
      %459 = vmatmul.mubr.f32.gmra.mrb[0].mxu0 %v267
      %v460 = vpop.f32.mrb[0].mxu0
      %v461 = vadd.f32 0.0, %v460
      %v462 = vpop.f32.mrb[0].mxu0
      %463 = vmatprep.mubr.f32.mxu0 0.0
      %464 = vmatmul.mubr.f32.gmra.mrb[0].mxu0 %v270
      %v465 = vpop.f32.mrb[0].mxu0
      %v466 = vadd.f32 0.0, %v465
      %v467 = vpop.f32.mrb[0].mxu0
      %468 = vmatprep.mubr.f32.mxu0 0.0
      %469 = vmatmul.mubr.f32.gmra.mrb[0].mxu0 %v273
      %v470 = vpop.f32.mrb[0].mxu0
      %v471 = vadd.f32 0.0, %v470
      %v472 = vpop.f32.mrb[0].mxu0
      %473 = vmatprep.mubr.f32.mxu0 0.0
      %474 = vmatmul.mubr.f32.gmra.mrb[0].mxu0 %v276
      %v475 = vpop.f32.mrb[0].mxu0
      %v476 = vadd.f32 0.0, %v475
      %v477 = vpop.f32.mrb[0].mxu0
      %478 = vmatprep.mubr.f32.mxu0 0.0
      %479 = vmatmul.mubr.f32.gmra.mrb[0].mxu0 %v279
      %v480 = vpop.f32.mrb[0].mxu0
      %v481 = vadd.f32 0.0, %v480
      %v482 = vpop.f32.mrb[0].mxu0
      %483 = vmatprep.mubr.f32.mxu0 0.0
      %484 = vmatmul.mubr.f32.gmra.mrb[0].mxu0 %v282
      %v485 = vpop.f32.mrb[0].mxu0
      %v486 = vadd.f32 0.0, %v485
      %v487 = vpop.f32.mrb[0].mxu0
      %488 = vmatprep.mubr.f32.mxu0 0.0
      %489 = vmatmul.mubr.f32.gmra.mrb[0].mxu0 %v285
      %v490 = vpop.f32.mrb[0].mxu0
      %v491 = vadd.f32 0.0, %v490
      %v492 = vpop.f32.mrb[0].mxu0
      %493 = vmatprep.mubr.f32.mxu0 0.0
      %494 = vmatmul.mubr.f32.gmra.mrb[0].mxu0 %v288
      %v495 = vpop.f32.mrb[0].mxu0
      %v496 = vadd.f32 0.0, %v495
      %v497 = vpop.f32.mrb[0].mxu0
      %498 = vmatprep.mubr.f32.mxu0 0.0
      %499 = vmatmul.mubr.f32.gmra.mrb[0].mxu0 %v291
      %v500 = vpop.f32.mrb[0].mxu0
      %v501 = vadd.f32 0.0, %v500
      %v502 = vpop.f32.mrb[0].mxu0
      %503 = vmatprep.mubr.f32.mxu0 0.0
      %504 = vmatmul.mubr.f32.gmra.mrb[0].mxu0 %v294
      %v505 = vpop.f32.mrb[0].mxu0
      %v506 = vadd.f32 0.0, %v505
      %v507 = vpop.f32.mrb[0].mxu0
      %508 = vmatprep.mubr.f32.mxu0 0.0
      %509 = vmatmul.mubr.f32.gmra.mrb[0].mxu0 %v297
      %v510 = vpop.f32.mrb[0].mxu0
      %v511 = vadd.f32 0.0, %v510
      %v512 = vpop.f32.mrb[0].mxu0
      %513 = vmatprep.mubr.f32.mxu0 0.0
      %514 = vmatmul.mubr.f32.gmra.mrb[0].mxu0 %v300
      %v515 = vpop.f32.mrb[0].mxu0
      %v516 = vadd.f32 0.0, %v515
      %v517 = vpop.f32.mrb[0].mxu0
      %518 = vmatprep.mubr.f32.mxu0 0.0
      %519 = vmatmul.mubr.f32.gmra.mrb[0].mxu0 %v303
      %v520 = vpop.f32.mrb[0].mxu0
      %v521 = vadd.f32 0.0, %v520
      %v522 = vpop.f32.mrb[0].mxu0
      %523 = vmatprep.mubr.f32.mxu0 0.0
      %524 = vmatmul.mubr.f32.gmra.mrb[0].mxu0 %v306
      %v525 = vpop.f32.mrb[0].mxu0
      %v526 = vadd.f32 0.0, %v525
      %v527 = vpop.f32.mrb[0].mxu0
      %528 = vmatprep.mubr.f32.mxu0 0.0
      %529 = vmatmul.mubr.f32.gmra.mrb[0].mxu0 %v309
      %v530 = vpop.f32.mrb[0].mxu0
      %v531 = vadd.f32 0.0, %v530
      %v532 = vpop.f32.mrb[0].mxu0
      %533 = vmatprep.mubr.f32.mxu0 0.0
      %534 = vmatmul.mubr.f32.gmra.mrb[0].mxu0 %v312
      %v535 = vpop.f32.mrb[0].mxu0
      %v536 = vadd.f32 0.0, %v535
      %v537 = vpop.f32.mrb[0].mxu0
      %538 = vdwg.mxu0
      %v539 = vld [vmem:[%s169] sm:$0xff]
      %v540 = vld [vmem:[%s169 + $0x8] sm:$0xff]
      %v541 = vld [vmem:[%s169 + $0x10] sm:$0xff]
      %v542 = vld [vmem:[%s169 + $0x18] sm:$0xff]
      %v543 = vld [vmem:[%s169 + $0x20] sm:$0xff]
      %v544 = vld [vmem:[%s169 + $0x28] sm:$0xff]
      %v545 = vld [vmem:[%s169 + $0x30] sm:$0xff]
      %v546 = vld [vmem:[%s169 + $0x38] sm:$0xff]
      %v547 = vld [vmem:[%s169 + $0x40] sm:$0xff]
      %v548 = vld [vmem:[%s169 + $0x48] sm:$0xff]
      %v549 = vld [vmem:[%s169 + $0x50] sm:$0xff]
      %v550 = vld [vmem:[%s169 + $0x58] sm:$0xff]
      %v551 = vld [vmem:[%s169 + $0x60] sm:$0xff]
      %v552 = vld [vmem:[%s169 + $0x68] sm:$0xff]
      %v553 = vld [vmem:[%s169 + $0x70] sm:$0xff]
      %v554 = vld [vmem:[%s169 + $0x78] sm:$0xff]
      %v555 = vld [vmem:[%s169 + $0x80] sm:$0xff]
      %v556 = vld [vmem:[%s169 + $0x88] sm:$0xff]
      %v557 = vld [vmem:[%s169 + $0x90] sm:$0xff]
      %v558 = vld [vmem:[%s169 + $0x98] sm:$0xff]
      %v559 = vld [vmem:[%s169 + $0xa0] sm:$0xff]
      %v560 = vld [vmem:[%s169 + $0xa8] sm:$0xff]
      %v561 = vld [vmem:[%s169 + $0xb0] sm:$0xff]
      %v562 = vld [vmem:[%s169 + $0xb8] sm:$0xff]
      %v563 = vld [vmem:[%s169 + $0xc0] sm:$0xff]
      %v564 = vld [vmem:[%s169 + $0xc8] sm:$0xff]
      %v565 = vld [vmem:[%s169 + $0xd0] sm:$0xff]
      %v566 = vld [vmem:[%s169 + $0xd8] sm:$0xff]
      %v567 = vld [vmem:[%s169 + $0xe0] sm:$0xff]
      %v568 = vld [vmem:[%s169 + $0xe8] sm:$0xff]
      %v569 = vld [vmem:[%s169 + $0xf0] sm:$0xff]
      %v570 = vld [vmem:[%s169 + $0xf8] sm:$0xff]
      %571 = vmatprep.subr.mxu0 0.0
      %572 = vmatpush1.msra.mxu0 %v381
      %573 = vmatprep.subr.mxu0 0.0
      %574 = vmatpush1.msra.mxu0 %v386
      %575 = vmatprep.subr.mxu0 0.0
      %576 = vmatpush1.msra.mxu0 %v391
      %577 = vmatprep.subr.mxu0 0.0
      %578 = vmatpush1.msra.mxu0 %v396
      %579 = vmatprep.subr.mxu0 0.0
      %580 = vmatpush1.msra.mxu0 %v401
      %581 = vmatprep.subr.mxu0 0.0
      %582 = vmatpush1.msra.mxu0 %v406
      %583 = vmatprep.subr.mxu0 0.0
      %584 = vmatpush1.msra.mxu0 %v411
      %585 = vmatprep.subr.mxu0 0.0
      %586 = vmatpush1.msra.mxu0 %v416
      %587 = vmatprep.subr.mxu0 0.0
      %588 = vmatpush1.msra.mxu0 %v421
      %589 = vmatprep.subr.mxu0 0.0
      %590 = vmatpush1.msra.mxu0 %v426
      %591 = vmatprep.subr.mxu0 0.0
      %592 = vmatpush1.msra.mxu0 %v431
      %593 = vmatprep.subr.mxu0 0.0
      %594 = vmatpush1.msra.mxu0 %v436
      %595 = vmatprep.subr.mxu0 0.0
      %596 = vmatpush1.msra.mxu0 %v441
      %597 = vmatprep.subr.mxu0 0.0
      %598 = vmatpush1.msra.mxu0 %v446
      %599 = vmatprep.subr.mxu0 0.0
      %600 = vmatpush1.msra.mxu0 %v451
      %601 = vmatprep.subr.mxu0 0.0
      %602 = vmatpush1.msra.mxu0 %v456
      %603 = vmatprep.subr.mxu0 0.0
      %604 = vmatpush1.msra.mxu0 %v461
      %605 = vmatprep.subr.mxu0 0.0
      %606 = vmatpush1.msra.mxu0 %v466
      %607 = vmatprep.subr.mxu0 0.0
      %608 = vmatpush1.msra.mxu0 %v471
      %609 = vmatprep.subr.mxu0 0.0
      %610 = vmatpush1.msra.mxu0 %v476
      %611 = vmatprep.subr.mxu0 0.0
      %612 = vmatpush1.msra.mxu0 %v481
      %613 = vmatprep.subr.mxu0 0.0
      %614 = vmatpush1.msra.mxu0 %v486
      %615 = vmatprep.subr.mxu0 0.0
      %616 = vmatpush1.msra.mxu0 %v491
      %617 = vmatprep.subr.mxu0 0.0
      %618 = vmatpush1.msra.mxu0 %v496
      %619 = vmatprep.subr.mxu0 0.0
      %620 = vmatpush1.msra.mxu0 %v501
      %621 = vmatprep.subr.mxu0 0.0
      %622 = vmatpush1.msra.mxu0 %v506
      %623 = vmatprep.subr.mxu0 0.0
      %624 = vmatpush1.msra.mxu0 %v511
      %625 = vmatprep.subr.mxu0 0.0
      %626 = vmatpush1.msra.mxu0 %v516
      %627 = vmatprep.subr.mxu0 0.0
      %628 = vmatpush1.msra.mxu0 %v521
      %629 = vmatprep.subr.mxu0 0.0
      %630 = vmatpush1.msra.mxu0 %v526
      %631 = vmatprep.subr.mxu0 0.0
      %632 = vmatpush1.msra.mxu0 %v531
      %633 = vmatprep.subr.mxu0 0.0
      %634 = vmatpush1.msra.mxu0 %v536
      %635 = vmatprep.mubr.f32.mxu0 %v540
      %636 = vmatmul.mubr.f32.gmra.mrb[0].mxu0 %v539
      %v637 = vpop.f32.mrb[0].mxu0
      %v638 = vadd.f32 0.0, %v637
      %v639 = vpop.f32.mrb[0].mxu0
      %640 = vmatprep.mubr.f32.mxu0 %v542
      %641 = vmatmul.mubr.f32.gmra.mrb[0].mxu0 %v541
      %v642 = vpop.f32.mrb[0].mxu0
      %v643 = vadd.f32 0.0, %v642
      %v644 = vpop.f32.mrb[0].mxu0
      %645 = vmatprep.mubr.f32.mxu0 %v544
      %646 = vmatmul.mubr.f32.gmra.mrb[0].mxu0 %v543
      %v647 = vpop.f32.mrb[0].mxu0
      %v648 = vadd.f32 0.0, %v647
      %v649 = vpop.f32.mrb[0].mxu0
      %650 = vmatprep.mubr.f32.mxu0 %v546
      %651 = vmatmul.mubr.f32.gmra.mrb[0].mxu0 %v545
      %v652 = vpop.f32.mrb[0].mxu0
      %v653 = vadd.f32 0.0, %v652
      %v654 = vpop.f32.mrb[0].mxu0
      %655 = vmatprep.mubr.f32.mxu0 %v548
      %656 = vmatmul.mubr.f32.gmra.mrb[0].mxu0 %v547
      %v657 = vpop.f32.mrb[0].mxu0
      %v658 = vadd.f32 0.0, %v657
      %v659 = vpop.f32.mrb[0].mxu0
      %660 = vmatprep.mubr.f32.mxu0 %v550
      %661 = vmatmul.mubr.f32.gmra.mrb[0].mxu0 %v549
      %v662 = vpop.f32.mrb[0].mxu0
      %v663 = vadd.f32 0.0, %v662
      %v664 = vpop.f32.mrb[0].mxu0
      %665 = vmatprep.mubr.f32.mxu0 %v552
      %666 = vmatmul.mubr.f32.gmra.mrb[0].mxu0 %v551
      %v667 = vpop.f32.mrb[0].mxu0
      %v668 = vadd.f32 0.0, %v667
      %v669 = vpop.f32.mrb[0].mxu0
      %670 = vmatprep.mubr.f32.mxu0 %v554
      %671 = vmatmul.mubr.f32.gmra.mrb[0].mxu0 %v553
      %v672 = vpop.f32.mrb[0].mxu0
      %v673 = vadd.f32 0.0, %v672
      %v674 = vpop.f32.mrb[0].mxu0
      %675 = vmatprep.mubr.f32.mxu0 %v556
      %676 = vmatmul.mubr.f32.gmra.mrb[0].mxu0 %v555
      %v677 = vpop.f32.mrb[0].mxu0
      %v678 = vadd.f32 0.0, %v677
      %v679 = vpop.f32.mrb[0].mxu0
      %680 = vmatprep.mubr.f32.mxu0 %v558
      %681 = vmatmul.mubr.f32.gmra.mrb[0].mxu0 %v557
      %v682 = vpop.f32.mrb[0].mxu0
      %v683 = vadd.f32 0.0, %v682
      %v684 = vpop.f32.mrb[0].mxu0
      %685 = vmatprep.mubr.f32.mxu0 %v560
      %686 = vmatmul.mubr.f32.gmra.mrb[0].mxu0 %v559
      %v687 = vpop.f32.mrb[0].mxu0
      %v688 = vadd.f32 0.0, %v687
      %v689 = vpop.f32.mrb[0].mxu0
      %690 = vmatprep.mubr.f32.mxu0 %v562
      %691 = vmatmul.mubr.f32.gmra.mrb[0].mxu0 %v561
      %v692 = vpop.f32.mrb[0].mxu0
      %v693 = vadd.f32 0.0, %v692
      %v694 = vpop.f32.mrb[0].mxu0
      %695 = vmatprep.mubr.f32.mxu0 %v564
      %696 = vmatmul.mubr.f32.gmra.mrb[0].mxu0 %v563
      %v697 = vpop.f32.mrb[0].mxu0
      %v698 = vadd.f32 0.0, %v697
      %v699 = vpop.f32.mrb[0].mxu0
      %700 = vmatprep.mubr.f32.mxu0 %v566
      %701 = vmatmul.mubr.f32.gmra.mrb[0].mxu0 %v565
      %v702 = vpop.f32.mrb[0].mxu0
      %v703 = vadd.f32 0.0, %v702
      %v704 = vpop.f32.mrb[0].mxu0
      %705 = vmatprep.mubr.f32.mxu0 %v568
      %706 = vmatmul.mubr.f32.gmra.mrb[0].mxu0 %v567
      %v707 = vpop.f32.mrb[0].mxu0
      %v708 = vadd.f32 0.0, %v707
      %v709 = vpop.f32.mrb[0].mxu0
      %710 = vmatprep.mubr.f32.mxu0 %v570
      %711 = vmatmul.mubr.f32.gmra.mrb[0].mxu0 %v569
      %v712 = vpop.f32.mrb[0].mxu0
      %v713 = vadd.f32 0.0, %v712
      %v714 = vpop.f32.mrb[0].mxu0
      %715 = vdwg.mxu0
      %716 = vst [vmem:[%s175] sm:$0xff] %v638
      %717 = vst [vmem:[%s175 + $0x8] sm:$0xff] %v643
      %718 = vst [vmem:[%s175 + $0x10] sm:$0xff] %v648
      %719 = vst [vmem:[%s175 + $0x18] sm:$0xff] %v653
      %720 = vst [vmem:[%s175 + $0x20] sm:$0xff] %v658
      %721 = vst [vmem:[%s175 + $0x28] sm:$0xff] %v663
      %722 = vst [vmem:[%s175 + $0x30] sm:$0xff] %v668
      %723 = vst [vmem:[%s175 + $0x38] sm:$0xff] %v673
      %724 = vst [vmem:[%s175 + $0x40] sm:$0xff] %v678
      %725 = vst [vmem:[%s175 + $0x48] sm:$0xff] %v683
      %726 = vst [vmem:[%s175 + $0x50] sm:$0xff] %v688
      %727 = vst [vmem:[%s175 + $0x58] sm:$0xff] %v693
      %728 = vst [vmem:[%s175 + $0x60] sm:$0xff] %v698
      %729 = vst [vmem:[%s175 + $0x68] sm:$0xff] %v703
      %730 = vst [vmem:[%s175 + $0x70] sm:$0xff] %v708
      %731 = vst [vmem:[%s175 + $0x78] sm:$0xff] %v713
      %s732 = smul.u32 16, %s14
      %p733 = scmp.lt.s32.totalorder %s732, 31
      %s734 = scalar_select %p733, %s732, 31
      %s735 = smul.addr %s734, 8
      %s736 = scalar_lea.vmem %s3, %s735
      // Predicated region
      $region33: #{gcn_layer.1} parent=31 // pred_check
        %p737 = pneg %p100
      $region34: #{gcn_layer.1} parent=31 // pred_check_branch
        %739 = sbr.rel (%p737) target = $region36
      $region35: #{gcn_layer.1} parent=31 // pred_region
        %s740 = smul.u32 16, %s14
      $region36: #{gcn_layer.1} parent=31 // pred_fallthru
        _
    $region32: #{gcn_layer.1} parent=5 // pred_fallthru
      _
    %p741 = scmp.le.s32.totalorder 2, %s9
    // Predicated region
    $region37: #{gcn_layer.1} parent=5 // pred_check
      %p742 = pneg %p741
    $region38: #{gcn_layer.1} parent=5 // pred_check_branch
      %744 = sbr.rel (%p742) target = $region40
    $region39: #{gcn_layer.1} parent=5 // pred_region
      %s745 = ssub.s32 %s9, 2
      // Predicated region
      $region41: #{gcn_layer.1} parent=39 // pred_check
        %p746 = pneg %p106
      $region42: #{gcn_layer.1} parent=39 // pred_check_branch
        %748 = sbr.rel (%p746) target = $region44
      $region43: #{gcn_layer.1} parent=39 // pred_region
        %s749 = smul.u32 16, %s15
        %p750 = scmp.lt.s32.totalorder %s749, 31
        %s751 = scalar_select %p750, %s749, 31
        %s752 = smul.addr %s751, 8
        %s753 = scalar_lea.vmem %s3, %s752
      $region44: #{gcn_layer.1} parent=39 // pred_fallthru
        _
    $region40: #{gcn_layer.1} parent=5 // pred_fallthru
      _
  $region6: #{gcn_layer.1} parent=0 // loop_footer
    %s13 = sadd.s32 1, %s9
  $region7: #{gcn_layer.1} parent=0 // loop_footer_branch
    %8 = sbr.rel target = $region3
  $region8: #{gcn_layer.1} parent=0 // loop_exit
    _

</llo_original>
